<compile_context>
chip_gen: v6e
topology: v6e:2x2x1
jax: 0.10.0
libtpu: 0.0.40
codegen_flags: <defaults>
</compile_context>

<pallas_src>
import functools

import jax
import jax.numpy as jnp
from jax.experimental import pallas as pl
from jax.experimental.pallas import tpu as pltpu

EPS = 1e-5
LANES = 128
NEG_BIG = -1e9  # padded-beta value: sigmoid(-1e9) == 0.0 exactly in f32


def _decoder_kernel(x_ref, w_ref, p_ref, o_ref, *, tb, batch):
    # x_ref: (tb*B, H) -- rows of `tb` independent decoder instances.
    # w_ref: (H, Wp);  p_ref: (3, Wp) = [bias; gamma; beta(padded to -1e9)].
    # o_ref: (tb, B, Wp).
    wp = w_ref.shape[1]
    params = p_ref[...]                                   # (3, Wp)
    bias = params[0:1, :]                                 # (1, Wp)
    gamma = params[1:2, :]
    beta = params[2:3, :]

    # One large row-batched matmul on the MXU: (tb*B, H) @ (H, Wp).
    x = x_ref[...]
    y = jnp.dot(x, w_ref[...], preferred_element_type=jnp.float32) + bias
    y = y.reshape(tb, batch, wp)                          # per-instance slabs

    # BatchNorm1d training-mode forward per instance: batch statistics over
    # axis=1 (sublane reduce), biased variance, affine folded into scale/shift.
    inv_b = 1.0 / batch
    mean = jnp.sum(y, axis=1, keepdims=True) * inv_b      # (tb, 1, Wp)
    ex2 = jnp.sum(y * y, axis=1, keepdims=True) * inv_b   # (tb, 1, Wp)
    var = jnp.maximum(ex2 - mean * mean, 0.0)             # guard cancellation
    scale = gamma[None] * jax.lax.rsqrt(var + EPS)        # (tb, 1, Wp)
    shift = beta[None] - mean * scale                     # padded lanes: -1e9
    y_hat = y * scale + shift                             # (tb, B, Wp)

    # SmoothSoftmax: padded lanes hit sigmoid(-1e9) == 0 exactly, so they do
    # not contribute to the row sum -- no explicit lane mask needed.
    s = jax.nn.sigmoid(y_hat)
    denom = jnp.sum(s, axis=-1, keepdims=True)            # (tb, B, 1)
    o_ref[...] = s / denom                                 # exact normalization


def pad_decoder_params(w_t, bias, gamma, beta):
    """Pad parameters to the lane-dense width ONCE (parameters are static).

    Returns (w_p (H, Wp), params_p (3, Wp), W).  Padded lanes have gamma = 0
    and beta = -1e9 so they are inert and vanish from the SmoothSoftmax sum.
    """
    H, W = w_t.shape
    Wp = pl.cdiv(W, LANES) * LANES
    w_p = jnp.zeros((H, Wp), jnp.float32).at[:, :W].set(w_t)
    params_p = jnp.zeros((3, Wp), jnp.float32)
    params_p = params_p.at[0, :W].set(bias)
    params_p = params_p.at[1, :W].set(gamma)
    params_p = params_p.at[2, :].set(
        jnp.full((Wp,), NEG_BIG, jnp.float32).at[:W].set(beta))
    return w_p, params_p, W


def _pick_tb(T, B, target_rows=128):
    # ~128 rows per MXU pass (fills v5e geometry; fine at toy size on
    # v6e/v7x -- raise toward 256 rows there for larger T, keeping >=2 grid
    # steps per TensorCore for v7x dual-TC sharding).
    tb = max(1, min(T, target_rows // max(B, 1)))
    while T % tb:
        tb -= 1
    return tb


def decoder_forward(core_output, w_p, params_p, width, tb=None):
    """core_output: (T, B, H) or (B, H) f32; w_p/params_p from pad_decoder_params.

    Each (B, H) slice along the leading axis corresponds to one call of the
    PyTorch Decoder in training mode (BatchNorm stats computed per slice).
    Returns (T, B, W) (or (B, W) for a 2-D input).
    """
    squeeze = core_output.ndim == 2
    if squeeze:
        core_output = core_output[None]
    T, B, H = core_output.shape
    Wp = w_p.shape[1]
    if tb is None:
        tb = _pick_tb(T, B)
    grid_t = T // tb

    x2 = core_output.reshape(T * B, H)  # free layout change in XLA

    kernel = functools.partial(_decoder_kernel, tb=tb, batch=B)
    out = pl.pallas_call(
        kernel,
        out_shape=jax.ShapeDtypeStruct((T, B, Wp), jnp.float32),
        grid=(grid_t,),
        in_specs=[
            pl.BlockSpec((tb * B, H), lambda t: (t, 0)),
            pl.BlockSpec((H, Wp), lambda t: (0, 0)),
            pl.BlockSpec((3, Wp), lambda t: (0, 0)),
        ],
        out_specs=pl.BlockSpec((tb, B, Wp), lambda t: (t, 0, 0)),
        compiler_params=pltpu.CompilerParams(
            dimension_semantics=("parallel",)),
    )(x2, w_p, params_p)

    # Toy-size convenience slice; at scale let consumers read the lane-padded
    # (T, B, Wp) output directly instead of paying an extra HBM round trip.
    out = out[:, :, :width]
    return out[0] if squeeze else out


def reference_forward(core_output, w_t, bias, gamma, beta):
    def one(x):
        y = x @ w_t + bias[None, :]
        mean = jnp.mean(y, axis=0, keepdims=True)
        var = jnp.mean((y - mean) ** 2, axis=0, keepdims=True)
        y_hat = (y - mean) / jnp.sqrt(var + EPS) * gamma[None, :] + beta[None, :]
        s = jax.nn.sigmoid(y_hat)
        return s / jnp.sum(s, axis=-1, keepdims=True)
    return jax.vmap(one)(core_output)


if __name__ == "__main__":
    core_hidden_size = 32   # H
    window_size = 16        # W (output attention width)
    batch = 8               # B
    timesteps = 16          # T -- independent decoder invocations in one call

    key = jax.random.PRNGKey(0)
    k_x, k_w, k_b, k_g, k_be = jax.random.split(key, 5)

    core_output = jax.random.normal(
        k_x, (timesteps, batch, core_hidden_size), jnp.float32)

    # nn.Linear(core_hidden_size, window_size): weight (W, H), bias (W,).
    # Stored pre-transposed as (H, W) for the kernel matmul.
    w = jax.random.normal(k_w, (window_size, core_hidden_size), jnp.float32) * 0.1
    w_t = jnp.transpose(w)                                     # (H, W)
    bias = jax.random.normal(k_b, (window_size,), jnp.float32) * 0.1

    # nn.BatchNorm1d(window_size) affine params (deterministic, non-trivial).
    gamma = 1.0 + 0.1 * jax.random.normal(k_g, (window_size,), jnp.float32)
    beta = 0.1 * jax.random.normal(k_be, (window_size,), jnp.float32)

    # Pad/fold parameters once (static), reuse across calls.
    w_p, params_p, width = pad_decoder_params(w_t, bias, gamma, beta)

    out = decoder_forward(core_output, w_p, params_p, width)
    out = jax.block_until_ready(out)

    ref = reference_forward(core_output, w_t, bias, gamma, beta)
    assert out.shape == (timesteps, batch, window_size)
    assert jnp.allclose(out, ref, atol=1e-4, rtol=1e-4), "mismatch vs reference"
    # rows of SmoothSoftmax output sum to 1 (exact normalization now)
    assert jnp.allclose(jnp.sum(out, axis=-1),
                        jnp.ones((timesteps, batch)), atol=1e-5)

    print("KERNEL_OK")
</pallas_src>

<mosaic_0001>
module attributes {stable_mosaic.version = 11 : i64} {
  func.func @_decoder_kernel(%arg0: i32, %arg1: memref<128x32xf32, #tpu.memory_space<vmem>>, %arg2: memref<32x128xf32, #tpu.memory_space<vmem>>, %arg3: memref<3x128xf32, #tpu.memory_space<vmem>>, %arg4: memref<16x8x128xf32, #tpu.memory_space<vmem>>) attributes {dimension_semantics = [#tpu.dimension_semantics<parallel>], iteration_bounds = array<i64: 1>, scalar_prefetch = 0 : i64, scratch_operands = 0 : i64, tpu.core_type = #tpu.core_type<tc>, window_params = [{transform_indices = @transform_0, window_bounds = array<i64: 128, 32>}, {pipeline_mode = #tpu.pipeline_mode<synchronous>, transform_indices = @transform_1, window_bounds = array<i64: 32, 128>}, {pipeline_mode = #tpu.pipeline_mode<synchronous>, transform_indices = @transform_2, window_bounds = array<i64: 3, 128>}, {transform_indices = @transform_3, window_bounds = array<i64: 16, 8, 128>}]} {
    %c0 = arith.constant 0 : index
    %c0_0 = arith.constant 0 : index
    %0 = vector.load %arg3[%c0, %c0_0] : memref<3x128xf32, #tpu.memory_space<vmem>>, vector<3x128xf32>
    %1 = vector.extract_strided_slice %0 {offsets = [0, 0], sizes = [1, 128], strides = [1, 1]} : vector<3x128xf32> to vector<1x128xf32>
    %2 = vector.extract_strided_slice %0 {offsets = [1, 0], sizes = [1, 128], strides = [1, 1]} : vector<3x128xf32> to vector<1x128xf32>
    %3 = vector.extract_strided_slice %0 {offsets = [2, 0], sizes = [1, 128], strides = [1, 1]} : vector<3x128xf32> to vector<1x128xf32>
    %c0_1 = arith.constant 0 : index
    %c0_2 = arith.constant 0 : index
    %4 = vector.load %arg1[%c0_1, %c0_2] : memref<128x32xf32, #tpu.memory_space<vmem>>, vector<128x32xf32>
    %c0_3 = arith.constant 0 : index
    %c0_4 = arith.constant 0 : index
    %5 = vector.load %arg2[%c0_3, %c0_4] : memref<32x128xf32, #tpu.memory_space<vmem>>, vector<32x128xf32>
    %cst = arith.constant dense<0.000000e+00> : vector<128x128xf32>
    %6 = tpu.matmul %4, %5, %cst {dimension_numbers = #tpu.dot_dimension_numbers<[1], [0], [0], [1], [0, 0, 1, 1], [], []>} : vector<128x32xf32>, vector<32x128xf32>, vector<128x128xf32> -> vector<128x128xf32>
    %7 = vector.broadcast %1 : vector<1x128xf32> to vector<128x128xf32>
    %8 = arith.addf %6, %7 : vector<128x128xf32>
    %9 = vector.shape_cast %8 : vector<128x128xf32> to vector<16x8x128xf32>
    %cst_5 = arith.constant dense<0.000000e+00> : vector<16x128xf32>
    %10 = vector.multi_reduction <add>, %9, %cst_5 [1] : vector<16x8x128xf32> to vector<16x128xf32>
    %11 = vector.shape_cast %10 : vector<16x128xf32> to vector<16x1x128xf32>
    %cst_6 = arith.constant 1.250000e-01 : f32
    %12 = vector.broadcast %cst_6 : f32 to vector<16x1x128xf32>
    %13 = arith.mulf %11, %12 : vector<16x1x128xf32>
    %14 = arith.mulf %9, %9 : vector<16x8x128xf32>
    %cst_7 = arith.constant dense<0.000000e+00> : vector<16x128xf32>
    %15 = vector.multi_reduction <add>, %14, %cst_7 [1] : vector<16x8x128xf32> to vector<16x128xf32>
    %16 = vector.shape_cast %15 : vector<16x128xf32> to vector<16x1x128xf32>
    %cst_8 = arith.constant 1.250000e-01 : f32
    %17 = vector.broadcast %cst_8 : f32 to vector<16x1x128xf32>
    %18 = arith.mulf %16, %17 : vector<16x1x128xf32>
    %19 = arith.mulf %13, %13 : vector<16x1x128xf32>
    %20 = arith.subf %18, %19 : vector<16x1x128xf32>
    %cst_9 = arith.constant 0.000000e+00 : f32
    %21 = vector.broadcast %cst_9 : f32 to vector<16x1x128xf32>
    %22 = arith.maximumf %20, %21 : vector<16x1x128xf32>
    %23 = vector.shape_cast %2 : vector<1x128xf32> to vector<1x1x128xf32>
    %cst_10 = arith.constant 9.99999974E-6 : f32
    %24 = vector.broadcast %cst_10 : f32 to vector<16x1x128xf32>
    %25 = arith.addf %22, %24 : vector<16x1x128xf32>
    %26 = math.rsqrt %25 : vector<16x1x128xf32>
    %27 = vector.broadcast %23 : vector<1x1x128xf32> to vector<16x1x128xf32>
    %28 = arith.mulf %27, %26 : vector<16x1x128xf32>
    %29 = vector.shape_cast %3 : vector<1x128xf32> to vector<1x1x128xf32>
    %30 = arith.mulf %13, %28 : vector<16x1x128xf32>
    %31 = vector.broadcast %29 : vector<1x1x128xf32> to vector<16x1x128xf32>
    %32 = arith.subf %31, %30 : vector<16x1x128xf32>
    %33 = vector.broadcast %28 : vector<16x1x128xf32> to vector<16x8x128xf32>
    %34 = arith.mulf %9, %33 : vector<16x8x128xf32>
    %35 = vector.broadcast %32 : vector<16x1x128xf32> to vector<16x8x128xf32>
    %36 = arith.addf %34, %35 : vector<16x8x128xf32>
    %37 = arith.negf %36 : vector<16x8x128xf32>
    %38 = math.exp %37 : vector<16x8x128xf32>
    %cst_11 = arith.constant 1.000000e+00 : f32
    %39 = vector.broadcast %cst_11 : f32 to vector<16x8x128xf32>
    %40 = arith.addf %39, %38 : vector<16x8x128xf32>
    %41 = arith.divf %39, %40 : vector<16x8x128xf32>
    %cst_12 = arith.constant dense<0.000000e+00> : vector<16x8xf32>
    %42 = vector.multi_reduction <add>, %41, %cst_12 [2] : vector<16x8x128xf32> to vector<16x8xf32>
    %43 = vector.shape_cast %42 : vector<16x8xf32> to vector<16x8x1xf32>
    %44 = vector.broadcast %43 : vector<16x8x1xf32> to vector<16x8x128xf32>
    %45 = arith.divf %41, %44 : vector<16x8x128xf32>
    %c0_13 = arith.constant 0 : index
    %c0_14 = arith.constant 0 : index
    %c0_15 = arith.constant 0 : index
    %46 = vector.load %arg4[%c0_13, %c0_14, %c0_15] : memref<16x8x128xf32, #tpu.memory_space<vmem>>, vector<16x8x128xf32>
    tpu.vector_store %arg4[%c0_13, %c0_14, %c0_15], %45 {strides = array<i32>} : memref<16x8x128xf32, #tpu.memory_space<vmem>>, vector<16x8x128xf32>,
    return
  }
  func.func @transform_0(%arg0: i32) -> (i32, i32) {
    %c0_i32 = arith.constant 0 : i32
    %c0_i32_0 = arith.constant 0 : i32
    return %arg0, %c0_i32 : i32, i32
  }
  func.func @transform_1(%arg0: i32) -> (i32, i32) {
    %c0_i32 = arith.constant 0 : i32
    %c0_i32_0 = arith.constant 0 : i32
    %c0_i32_1 = arith.constant 0 : i32
    return %c0_i32, %c0_i32_0 : i32, i32
  }
  func.func @transform_2(%arg0: i32) -> (i32, i32) {
    %c0_i32 = arith.constant 0 : i32
    %c0_i32_0 = arith.constant 0 : i32
    %c0_i32_1 = arith.constant 0 : i32
    return %c0_i32, %c0_i32_0 : i32, i32
  }
  func.func @transform_3(%arg0: i32) -> (i32, i32, i32) {
    %c0_i32 = arith.constant 0 : i32
    %c0_i32_0 = arith.constant 0 : i32
    %c0_i32_1 = arith.constant 0 : i32
    return %arg0, %c0_i32, %c0_i32_0 : i32, i32, i32
  }
}

</mosaic_0001>

<llo_original>
// kernel: tpu_custom_call.1
$region0: #{tpu_custom_call.1}
  #allocation0 [shape = 'u32[]', space=smem, size = 0x4, offset = 0x4, fixed_abs, tag = 'smem constant byte address 0x4 - core index']
  #allocation1 [shape = 'u32[144,128]{1,0:T(1,128)}', space=vmem, size = 0x12000, scoped, tag = 'internal scratch']
  %s0 = inlined_call_operand.vmem [shape: f32[128,32], index: 0, kind: input, shape index: {}]
  %s1 = inlined_call_operand.vmem [shape: f32[32,128], index: 1, kind: input, shape index: {}]
  %s2 = inlined_call_operand.vmem [shape: f32[3,128], index: 2, kind: input, shape index: {}]
  %s3 = inlined_call_operand.hbm [shape: f32[16,8,128], index: 3, kind: output, shape index: {}]
  %s4 = sld [smem:[#allocation0]]
  $region22: #{tpu_custom_call.1} parent=0
    _
  %s6 = ssub.s32 1, %s4
  %s7 = scalar_select 0, %s6, %s4
  $region1: #{tpu_custom_call.1} parent=0
    #allocation2 [shape = 'u8[65536]{0}', space=vmem, size = 0x10000, scoped, tag = 'output window, operand 0, single buffered']
    #allocation3 [shape = 's32[1]{0}', space=sflag, size = 0x4, scoped, tag = 'scoped memory for tpu_custom_call.1']
    %8 = vsyncpa [#allocation3], 0
    // Predicated region
    $region2: #{tpu_custom_call.1} parent=1 // pred_check
      _
    $region3: #{tpu_custom_call.1} parent=1 // pred_check_branch
      %10 = sbr.rel (0) target = $region5
    $region4: #{tpu_custom_call.1} parent=1 // pred_region
      _
    $region5: #{tpu_custom_call.1} parent=1 // pred_fallthru
      _
    // Predicated region
    $region6: #{tpu_custom_call.1} parent=1 // pred_check
      _
    $region7: #{tpu_custom_call.1} parent=1 // pred_check_branch
      %12 = sbr.rel (0) target = $region9
    $region8: #{tpu_custom_call.1} parent=1 // pred_region
      _
    $region9: #{tpu_custom_call.1} parent=1 // pred_fallthru
      _
    // Predicated region
    $region10: #{tpu_custom_call.1} parent=1 // pred_check
      _
    $region11: #{tpu_custom_call.1} parent=1 // pred_check_branch
      %14 = sbr.rel (0) target = $region13
    $region12: #{tpu_custom_call.1} parent=1 // pred_region
      _
    $region13: #{tpu_custom_call.1} parent=1 // pred_fallthru
      _
    %v15 = vld [vmem:[%s2] sm:$0x7]
    %v16 = vld [vmem:[%s0] sm:$0xff]
    %v17 = vld [vmem:[%s0 + $0x8] sm:$0xff]
    %v18 = vld [vmem:[%s0 + $0x10] sm:$0xff]
    %v19 = vld [vmem:[%s0 + $0x18] sm:$0xff]
    %v20 = vld [vmem:[%s0 + $0x20] sm:$0xff]
    %v21 = vld [vmem:[%s0 + $0x28] sm:$0xff]
    %v22 = vld [vmem:[%s0 + $0x30] sm:$0xff]
    %v23 = vld [vmem:[%s0 + $0x38] sm:$0xff]
    %v24 = vld [vmem:[%s0 + $0x40] sm:$0xff]
    %v25 = vld [vmem:[%s0 + $0x48] sm:$0xff]
    %v26 = vld [vmem:[%s0 + $0x50] sm:$0xff]
    %v27 = vld [vmem:[%s0 + $0x58] sm:$0xff]
    %v28 = vld [vmem:[%s0 + $0x60] sm:$0xff]
    %v29 = vld [vmem:[%s0 + $0x68] sm:$0xff]
    %v30 = vld [vmem:[%s0 + $0x70] sm:$0xff]
    %v31 = vld [vmem:[%s0 + $0x78] sm:$0xff]
    %v32 = vld [vmem:[%s1] sm:$0xff]
    %v33 = vld [vmem:[%s1 + $0x8] sm:$0xff]
    %v34 = vld [vmem:[%s1 + $0x10] sm:$0xff]
    %v35 = vld [vmem:[%s1 + $0x18] sm:$0xff]
    %v36 = vlaneseq
    %v37 = vshrl.u32 %v36, 7
    %v38 = vsub.s32 0, %v37
    %v39 = vrot.slane %v15, %v38
    %vm40 = vcmask 261120
    %v42 = vsel %vm40, %v16, 0
    %v45 = vsel %vm40, %v17, 0
    %v48 = vsel %vm40, %v18, 0
    %v51 = vsel %vm40, %v19, 0
    %v54 = vsel %vm40, %v20, 0
    %v57 = vsel %vm40, %v21, 0
    %v60 = vsel %vm40, %v22, 0
    %v63 = vsel %vm40, %v23, 0
    %v66 = vsel %vm40, %v24, 0
    %v69 = vsel %vm40, %v25, 0
    %v72 = vsel %vm40, %v26, 0
    %v75 = vsel %vm40, %v27, 0
    %v78 = vsel %vm40, %v28, 0
    %v81 = vsel %vm40, %v29, 0
    %v84 = vsel %vm40, %v30, 0
    %v87 = vsel %vm40, %v31, 0
    %89 = vmatprep.subr.mxu0 0.0
    %90 = vmatpush1.msra.mxu0 0.0
    %91 = vmatprep.subr.mxu0 0.0
    %92 = vmatpush1.msra.mxu0 0.0
    %93 = vmatprep.subr.mxu0 0.0
    %94 = vmatpush1.msra.mxu0 0.0
    %95 = vmatprep.subr.mxu0 0.0
    %96 = vmatpush1.msra.mxu0 0.0
    %97 = vmatprep.subr.mxu0 0.0
    %98 = vmatpush1.msra.mxu0 0.0
    %99 = vmatprep.subr.mxu0 0.0
    %100 = vmatpush1.msra.mxu0 0.0
    %101 = vmatprep.subr.mxu0 0.0
    %102 = vmatpush1.msra.mxu0 0.0
    %103 = vmatprep.subr.mxu0 0.0
    %104 = vmatpush1.msra.mxu0 0.0
    %105 = vmatprep.subr.mxu0 0.0
    %106 = vmatpush1.msra.mxu0 0.0
    %107 = vmatprep.subr.mxu0 0.0
    %108 = vmatpush1.msra.mxu0 0.0
    %109 = vmatprep.subr.mxu0 0.0
    %110 = vmatpush1.msra.mxu0 0.0
    %111 = vmatprep.subr.mxu0 0.0
    %112 = vmatpush1.msra.mxu0 0.0
    %113 = vmatprep.subr.mxu0 0.0
    %114 = vmatpush1.msra.mxu0 %v35
    %115 = vmatprep.subr.mxu0 0.0
    %116 = vmatpush1.msra.mxu0 %v34
    %117 = vmatprep.subr.mxu0 0.0
    %118 = vmatpush1.msra.mxu0 %v33
    %119 = vmatprep.subr.mxu0 0.0
    %120 = vmatpush1.msra.mxu0 %v32
    %121 = vmatprep.subr.mxu0 0.0
    %122 = vmatpush2.msra.mxu0 0.0
    %123 = vmatprep.subr.mxu0 0.0
    %124 = vmatpush2.msra.mxu0 0.0
    %125 = vmatprep.subr.mxu0 0.0
    %126 = vmatpush2.msra.mxu0 0.0
    %127 = vmatprep.subr.mxu0 0.0
    %128 = vmatpush2.msra.mxu0 0.0
    %129 = vmatprep.subr.mxu0 0.0
    %130 = vmatpush2.msra.mxu0 0.0
    %131 = vmatprep.subr.mxu0 0.0
    %132 = vmatpush2.msra.mxu0 0.0
    %133 = vmatprep.subr.mxu0 0.0
    %134 = vmatpush2.msra.mxu0 0.0
    %135 = vmatprep.subr.mxu0 0.0
    %136 = vmatpush2.msra.mxu0 0.0
    %137 = vmatprep.subr.mxu0 0.0
    %138 = vmatpush2.msra.mxu0 0.0
    %139 = vmatprep.subr.mxu0 0.0
    %140 = vmatpush2.msra.mxu0 0.0
    %141 = vmatprep.subr.mxu0 0.0
    %142 = vmatpush2.msra.mxu0 0.0
    %143 = vmatprep.subr.mxu0 0.0
    %144 = vmatpush2.msra.mxu0 0.0
    %145 = vmatprep.subr.mxu0 0.0
    %146 = vmatpush2.msra.mxu0 0.0
    %147 = vmatprep.subr.mxu0 0.0
    %148 = vmatpush2.msra.mxu0 0.0
    %149 = vmatprep.subr.mxu0 0.0
    %150 = vmatpush2.msra.mxu0 0.0
    %151 = vmatprep.subr.mxu0 0.0
    %152 = vmatpush2.msra.mxu0 0.0
    %153 = vmatprep.mubr.f32.mxu0 0.0
    %154 = vmatmul.mubr.f32.gmra.mxu0 %v42
    %v155 = vpop.f32.mrf.mxu0
    %v156 = vadd.f32 %v39, %v155
    %v157 = vpop.f32.mrf.mxu0
    %158 = vmatprep.mubr.f32.mxu0 0.0
    %159 = vmatmul.mubr.f32.gmra.mxu0 %v45
    %v160 = vpop.f32.mrf.mxu0
    %v161 = vadd.f32 %v39, %v160
    %v162 = vpop.f32.mrf.mxu0
    %163 = vmatprep.mubr.f32.mxu0 0.0
    %164 = vmatmul.mubr.f32.gmra.mxu0 %v48
    %v165 = vpop.f32.mrf.mxu0
    %v166 = vadd.f32 %v39, %v165
    %v167 = vpop.f32.mrf.mxu0
    %168 = vmatprep.mubr.f32.mxu0 0.0
    %169 = vmatmul.mubr.f32.gmra.mxu0 %v51
    %v170 = vpop.f32.mrf.mxu0
    %v171 = vadd.f32 %v39, %v170
    %v172 = vpop.f32.mrf.mxu0
    %173 = vmatprep.mubr.f32.mxu0 0.0
    %174 = vmatmul.mubr.f32.gmra.mxu0 %v54
    %v175 = vpop.f32.mrf.mxu0
    %v176 = vadd.f32 %v39, %v175
    %v177 = vpop.f32.mrf.mxu0
    %178 = vmatprep.mubr.f32.mxu0 0.0
    %179 = vmatmul.mubr.f32.gmra.mxu0 %v57
    %v180 = vpop.f32.mrf.mxu0
    %v181 = vadd.f32 %v39, %v180
    %v182 = vpop.f32.mrf.mxu0
    %183 = vmatprep.mubr.f32.mxu0 0.0
    %184 = vmatmul.mubr.f32.gmra.mxu0 %v60
    %v185 = vpop.f32.mrf.mxu0
    %v186 = vadd.f32 %v39, %v185
    %v187 = vpop.f32.mrf.mxu0
    %188 = vmatprep.mubr.f32.mxu0 0.0
    %189 = vmatmul.mubr.f32.gmra.mxu0 %v63
    %v190 = vpop.f32.mrf.mxu0
    %v191 = vadd.f32 %v39, %v190
    %v192 = vpop.f32.mrf.mxu0
    %193 = vmatprep.mubr.f32.mxu0 0.0
    %194 = vmatmul.mubr.f32.gmra.mxu0 %v66
    %v195 = vpop.f32.mrf.mxu0
    %v196 = vadd.f32 %v39, %v195
    %v197 = vpop.f32.mrf.mxu0
    %198 = vmatprep.mubr.f32.mxu0 0.0
    %199 = vmatmul.mubr.f32.gmra.mxu0 %v69
    %v200 = vpop.f32.mrf.mxu0
    %v201 = vadd.f32 %v39, %v200
    %v202 = vpop.f32.mrf.mxu0
    %203 = vmatprep.mubr.f32.mxu0 0.0
    %204 = vmatmul.mubr.f32.gmra.mxu0 %v72
    %v205 = vpop.f32.mrf.mxu0
    %v206 = vadd.f32 %v39, %v205
    %v207 = vpop.f32.mrf.mxu0
    %208 = vmatprep.mubr.f32.mxu0 0.0
    %209 = vmatmul.mubr.f32.gmra.mxu0 %v75
    %v210 = vpop.f32.mrf.mxu0
    %v211 = vadd.f32 %v39, %v210
    %v212 = vpop.f32.mrf.mxu0
    %213 = vmatprep.mubr.f32.mxu0 0.0
    %214 = vmatmul.mubr.f32.gmra.mxu0 %v78
    %v215 = vpop.f32.mrf.mxu0
    %v216 = vadd.f32 %v39, %v215
    %v217 = vpop.f32.mrf.mxu0
    %218 = vmatprep.mubr.f32.mxu0 0.0
    %219 = vmatmul.mubr.f32.gmra.mxu0 %v81
    %v220 = vpop.f32.mrf.mxu0
    %v221 = vadd.f32 %v39, %v220
    %v222 = vpop.f32.mrf.mxu0
    %223 = vmatprep.mubr.f32.mxu0 0.0
    %224 = vmatmul.mubr.f32.gmra.mxu0 %v84
    %v225 = vpop.f32.mrf.mxu0
    %v226 = vadd.f32 %v39, %v225
    %v227 = vpop.f32.mrf.mxu0
    %228 = vmatprep.mubr.f32.mxu0 0.0
    %229 = vmatmul.mubr.f32.gmra.mxu0 %v87
    %v230 = vpop.f32.mrf.mxu0
    %v231 = vadd.f32 %v39, %v230
    %v232 = vpop.f32.mrf.mxu0
    %233 = vdwg.mxu0
    %v234 = vrot.slane %v156, 4
    %v235 = vadd.f32 %v156, %v234
    %v236 = vrot.slane %v235, 2
    %v237 = vadd.f32 %v235, %v236
    %v238 = vrot.slane %v237, 1
    %v239 = vadd.f32 %v237, %v238
    %v240 = vrot.slane %v161, 4
    %v241 = vadd.f32 %v161, %v240
    %v242 = vrot.slane %v241, 2
    %v243 = vadd.f32 %v241, %v242
    %v244 = vrot.slane %v243, 1
    %v245 = vadd.f32 %v243, %v244
    %v246 = vrot.slane %v166, 4
    %v247 = vadd.f32 %v166, %v246
    %v248 = vrot.slane %v247, 2
    %v249 = vadd.f32 %v247, %v248
    %v250 = vrot.slane %v249, 1
    %v251 = vadd.f32 %v249, %v250
    %v252 = vrot.slane %v171, 4
    %v253 = vadd.f32 %v171, %v252
    %v254 = vrot.slane %v253, 2
    %v255 = vadd.f32 %v253, %v254
    %v256 = vrot.slane %v255, 1
    %v257 = vadd.f32 %v255, %v256
    %v258 = vrot.slane %v176, 4
    %v259 = vadd.f32 %v176, %v258
    %v260 = vrot.slane %v259, 2
    %v261 = vadd.f32 %v259, %v260
    %v262 = vrot.slane %v261, 1
    %v263 = vadd.f32 %v261, %v262
    %v264 = vrot.slane %v181, 4
    %v265 = vadd.f32 %v181, %v264
    %v266 = vrot.slane %v265, 2
    %v267 = vadd.f32 %v265, %v266
    %v268 = vrot.slane %v267, 1
    %v269 = vadd.f32 %v267, %v268
    %v270 = vrot.slane %v186, 4
    %v271 = vadd.f32 %v186, %v270
    %v272 = vrot.slane %v271, 2
    %v273 = vadd.f32 %v271, %v272
    %v274 = vrot.slane %v273, 1
    %v275 = vadd.f32 %v273, %v274
    %v276 = vrot.slane %v191, 4
    %v277 = vadd.f32 %v191, %v276
    %v278 = vrot.slane %v277, 2
    %v279 = vadd.f32 %v277, %v278
    %v280 = vrot.slane %v279, 1
    %v281 = vadd.f32 %v279, %v280
    %v282 = vrot.slane %v196, 4
    %v283 = vadd.f32 %v196, %v282
    %v284 = vrot.slane %v283, 2
    %v285 = vadd.f32 %v283, %v284
    %v286 = vrot.slane %v285, 1
    %v287 = vadd.f32 %v285, %v286
    %v288 = vrot.slane %v201, 4
    %v289 = vadd.f32 %v201, %v288
    %v290 = vrot.slane %v289, 2
    %v291 = vadd.f32 %v289, %v290
    %v292 = vrot.slane %v291, 1
    %v293 = vadd.f32 %v291, %v292
    %v294 = vrot.slane %v206, 4
    %v295 = vadd.f32 %v206, %v294
    %v296 = vrot.slane %v295, 2
    %v297 = vadd.f32 %v295, %v296
    %v298 = vrot.slane %v297, 1
    %v299 = vadd.f32 %v297, %v298
    %v300 = vrot.slane %v211, 4
    %v301 = vadd.f32 %v211, %v300
    %v302 = vrot.slane %v301, 2
    %v303 = vadd.f32 %v301, %v302
    %v304 = vrot.slane %v303, 1
    %v305 = vadd.f32 %v303, %v304
    %v306 = vrot.slane %v216, 4
    %v307 = vadd.f32 %v216, %v306
    %v308 = vrot.slane %v307, 2
    %v309 = vadd.f32 %v307, %v308
    %v310 = vrot.slane %v309, 1
    %v311 = vadd.f32 %v309, %v310
    %v312 = vrot.slane %v221, 4
    %v313 = vadd.f32 %v221, %v312
    %v314 = vrot.slane %v313, 2
    %v315 = vadd.f32 %v313, %v314
    %v316 = vrot.slane %v315, 1
    %v317 = vadd.f32 %v315, %v316
    %v318 = vrot.slane %v226, 4
    %v319 = vadd.f32 %v226, %v318
    %v320 = vrot.slane %v319, 2
    %v321 = vadd.f32 %v319, %v320
    %v322 = vrot.slane %v321, 1
    %v323 = vadd.f32 %v321, %v322
    %v324 = vrot.slane %v231, 4
    %v325 = vadd.f32 %v231, %v324
    %v326 = vrot.slane %v325, 2
    %v327 = vadd.f32 %v325, %v326
    %v328 = vrot.slane %v327, 1
    %v329 = vadd.f32 %v327, %v328
    %v330 = vmul.f32 %v239, 0.125
    %v331 = vmul.f32 %v245, 0.125
    %v332 = vmul.f32 %v251, 0.125
    %v333 = vmul.f32 %v257, 0.125
    %v334 = vmul.f32 %v263, 0.125
    %v335 = vmul.f32 %v269, 0.125
    %v336 = vmul.f32 %v275, 0.125
    %v337 = vmul.f32 %v281, 0.125
    %v338 = vmul.f32 %v287, 0.125
    %v339 = vmul.f32 %v293, 0.125
    %v340 = vmul.f32 %v299, 0.125
    %v341 = vmul.f32 %v305, 0.125
    %v342 = vmul.f32 %v311, 0.125
    %v343 = vmul.f32 %v317, 0.125
    %v344 = vmul.f32 %v323, 0.125
    %v345 = vmul.f32 %v329, 0.125
    %v346 = vmul.f32 %v156, %v156
    %v347 = vmul.f32 %v161, %v161
    %v348 = vmul.f32 %v166, %v166
    %v349 = vmul.f32 %v171, %v171
    %v350 = vmul.f32 %v176, %v176
    %v351 = vmul.f32 %v181, %v181
    %v352 = vmul.f32 %v186, %v186
    %v353 = vmul.f32 %v191, %v191
    %v354 = vmul.f32 %v196, %v196
    %v355 = vmul.f32 %v201, %v201
    %v356 = vmul.f32 %v206, %v206
    %v357 = vmul.f32 %v211, %v211
    %v358 = vmul.f32 %v216, %v216
    %v359 = vmul.f32 %v221, %v221
    %v360 = vmul.f32 %v226, %v226
    %v361 = vmul.f32 %v231, %v231
    %v362 = vrot.slane %v346, 4
    %v363 = vadd.f32 %v346, %v362
    %v364 = vrot.slane %v363, 2
    %v365 = vadd.f32 %v363, %v364
    %v366 = vrot.slane %v365, 1
    %v367 = vadd.f32 %v365, %v366
    %v368 = vrot.slane %v347, 4
    %v369 = vadd.f32 %v347, %v368
    %v370 = vrot.slane %v369, 2
    %v371 = vadd.f32 %v369, %v370
    %v372 = vrot.slane %v371, 1
    %v373 = vadd.f32 %v371, %v372
    %v374 = vrot.slane %v348, 4
    %v375 = vadd.f32 %v348, %v374
    %v376 = vrot.slane %v375, 2
    %v377 = vadd.f32 %v375, %v376
    %v378 = vrot.slane %v377, 1
    %v379 = vadd.f32 %v377, %v378
    %v380 = vrot.slane %v349, 4
    %v381 = vadd.f32 %v349, %v380
    %v382 = vrot.slane %v381, 2
    %v383 = vadd.f32 %v381, %v382
    %v384 = vrot.slane %v383, 1
    %v385 = vadd.f32 %v383, %v384
    %v386 = vrot.slane %v350, 4
    %v387 = vadd.f32 %v350, %v386
    %v388 = vrot.slane %v387, 2
    %v389 = vadd.f32 %v387, %v388
    %v390 = vrot.slane %v389, 1
    %v391 = vadd.f32 %v389, %v390
    %v392 = vrot.slane %v351, 4
    %v393 = vadd.f32 %v351, %v392
    %v394 = vrot.slane %v393, 2
    %v395 = vadd.f32 %v393, %v394
    %v396 = vrot.slane %v395, 1
    %v397 = vadd.f32 %v395, %v396
    %v398 = vrot.slane %v352, 4
    %v399 = vadd.f32 %v352, %v398
    %v400 = vrot.slane %v399, 2
    %v401 = vadd.f32 %v399, %v400
    %v402 = vrot.slane %v401, 1
    %v403 = vadd.f32 %v401, %v402
    %v404 = vrot.slane %v353, 4
    %v405 = vadd.f32 %v353, %v404
    %v406 = vrot.slane %v405, 2
    %v407 = vadd.f32 %v405, %v406
    %v408 = vrot.slane %v407, 1
    %v409 = vadd.f32 %v407, %v408
    %v410 = vrot.slane %v354, 4
    %v411 = vadd.f32 %v354, %v410
    %v412 = vrot.slane %v411, 2
    %v413 = vadd.f32 %v411, %v412
    %v414 = vrot.slane %v413, 1
    %v415 = vadd.f32 %v413, %v414
    %v416 = vrot.slane %v355, 4
    %v417 = vadd.f32 %v355, %v416
    %v418 = vrot.slane %v417, 2
    %v419 = vadd.f32 %v417, %v418
    %v420 = vrot.slane %v419, 1
    %v421 = vadd.f32 %v419, %v420
    %v422 = vrot.slane %v356, 4
    %v423 = vadd.f32 %v356, %v422
    %v424 = vrot.slane %v423, 2
    %v425 = vadd.f32 %v423, %v424
    %v426 = vrot.slane %v425, 1
    %v427 = vadd.f32 %v425, %v426
    %v428 = vrot.slane %v357, 4
    %v429 = vadd.f32 %v357, %v428
    %v430 = vrot.slane %v429, 2
    %v431 = vadd.f32 %v429, %v430
    %v432 = vrot.slane %v431, 1
    %v433 = vadd.f32 %v431, %v432
    %v434 = vrot.slane %v358, 4
    %v435 = vadd.f32 %v358, %v434
    %v436 = vrot.slane %v435, 2
    %v437 = vadd.f32 %v435, %v436
    %v438 = vrot.slane %v437, 1
    %v439 = vadd.f32 %v437, %v438
    %v440 = vrot.slane %v359, 4
    %v441 = vadd.f32 %v359, %v440
    %v442 = vrot.slane %v441, 2
    %v443 = vadd.f32 %v441, %v442
    %v444 = vrot.slane %v443, 1
    %v445 = vadd.f32 %v443, %v444
    %v446 = vrot.slane %v360, 4
    %v447 = vadd.f32 %v360, %v446
    %v448 = vrot.slane %v447, 2
    %v449 = vadd.f32 %v447, %v448
    %v450 = vrot.slane %v449, 1
    %v451 = vadd.f32 %v449, %v450
    %v452 = vrot.slane %v361, 4
    %v453 = vadd.f32 %v361, %v452
    %v454 = vrot.slane %v453, 2
    %v455 = vadd.f32 %v453, %v454
    %v456 = vrot.slane %v455, 1
    %v457 = vadd.f32 %v455, %v456
    %v458 = vmul.f32 %v367, 0.125
    %v459 = vmul.f32 %v373, 0.125
    %v460 = vmul.f32 %v379, 0.125
    %v461 = vmul.f32 %v385, 0.125
    %v462 = vmul.f32 %v391, 0.125
    %v463 = vmul.f32 %v397, 0.125
    %v464 = vmul.f32 %v403, 0.125
    %v465 = vmul.f32 %v409, 0.125
    %v466 = vmul.f32 %v415, 0.125
    %v467 = vmul.f32 %v421, 0.125
    %v468 = vmul.f32 %v427, 0.125
    %v469 = vmul.f32 %v433, 0.125
    %v470 = vmul.f32 %v439, 0.125
    %v471 = vmul.f32 %v445, 0.125
    %v472 = vmul.f32 %v451, 0.125
    %v473 = vmul.f32 %v457, 0.125
    %v474 = vmul.f32 %v330, %v330
    %v475 = vmul.f32 %v331, %v331
    %v476 = vmul.f32 %v332, %v332
    %v477 = vmul.f32 %v333, %v333
    %v478 = vmul.f32 %v334, %v334
    %v479 = vmul.f32 %v335, %v335
    %v480 = vmul.f32 %v336, %v336
    %v481 = vmul.f32 %v337, %v337
    %v482 = vmul.f32 %v338, %v338
    %v483 = vmul.f32 %v339, %v339
    %v484 = vmul.f32 %v340, %v340
    %v485 = vmul.f32 %v341, %v341
    %v486 = vmul.f32 %v342, %v342
    %v487 = vmul.f32 %v343, %v343
    %v488 = vmul.f32 %v344, %v344
    %v489 = vmul.f32 %v345, %v345
    %v490 = vsub.f32 %v458, %v474
    %v491 = vsub.f32 %v459, %v475
    %v492 = vsub.f32 %v460, %v476
    %v493 = vsub.f32 %v461, %v477
    %v494 = vsub.f32 %v462, %v478
    %v495 = vsub.f32 %v463, %v479
    %v496 = vsub.f32 %v464, %v480
    %v497 = vsub.f32 %v465, %v481
    %v498 = vsub.f32 %v466, %v482
    %v499 = vsub.f32 %v467, %v483
    %v500 = vsub.f32 %v468, %v484
    %v501 = vsub.f32 %v469, %v485
    %v502 = vsub.f32 %v470, %v486
    %v503 = vsub.f32 %v471, %v487
    %v504 = vsub.f32 %v472, %v488
    %v505 = vsub.f32 %v473, %v489
    %v506 = vmax.f32 %v490, 0.0
    %v507 = vmax.f32 %v491, 0.0
    %v508 = vmax.f32 %v492, 0.0
    %v509 = vmax.f32 %v493, 0.0
    %v510 = vmax.f32 %v494, 0.0
    %v511 = vmax.f32 %v495, 0.0
    %v512 = vmax.f32 %v496, 0.0
    %v513 = vmax.f32 %v497, 0.0
    %v514 = vmax.f32 %v498, 0.0
    %v515 = vmax.f32 %v499, 0.0
    %v516 = vmax.f32 %v500, 0.0
    %v517 = vmax.f32 %v501, 0.0
    %v518 = vmax.f32 %v502, 0.0
    %v519 = vmax.f32 %v503, 0.0
    %v520 = vmax.f32 %v504, 0.0
    %v521 = vmax.f32 %v505, 0.0
    %v522 = vadd.f32 %v506, 1e-05
    %v523 = vadd.f32 %v507, 1e-05
    %v524 = vadd.f32 %v508, 1e-05
    %v525 = vadd.f32 %v509, 1e-05
    %v526 = vadd.f32 %v510, 1e-05
    %v527 = vadd.f32 %v511, 1e-05
    %v528 = vadd.f32 %v512, 1e-05
    %v529 = vadd.f32 %v513, 1e-05
    %v530 = vadd.f32 %v514, 1e-05
    %v531 = vadd.f32 %v515, 1e-05
    %v532 = vadd.f32 %v516, 1e-05
    %v533 = vadd.f32 %v517, 1e-05
    %v534 = vadd.f32 %v518, 1e-05
    %v535 = vadd.f32 %v519, 1e-05
    %v536 = vadd.f32 %v520, 1e-05
    %v537 = vadd.f32 %v521, 1e-05
    %v538 = vrsqrt.pop %v522
    %v539 = vrsqrt.pop %v523
    %v540 = vrsqrt.pop %v524
    %v541 = vrsqrt.pop %v525
    %v542 = vrsqrt.pop %v526
    %v543 = vrsqrt.pop %v527
    %v544 = vrsqrt.pop %v528
    %v545 = vrsqrt.pop %v529
    %v546 = vrsqrt.pop %v530
    %v547 = vrsqrt.pop %v531
    %v548 = vrsqrt.pop %v532
    %v549 = vrsqrt.pop %v533
    %v550 = vrsqrt.pop %v534
    %v551 = vrsqrt.pop %v535
    %v552 = vrsqrt.pop %v536
    %v553 = vrsqrt.pop %v537
    %v554 = vmul.f32 %v15, %v538
    %v555 = vmul.f32 %v15, %v539
    %v556 = vmul.f32 %v15, %v540
    %v557 = vmul.f32 %v15, %v541
    %v558 = vmul.f32 %v15, %v542
    %v559 = vmul.f32 %v15, %v543
    %v560 = vmul.f32 %v15, %v544
    %v561 = vmul.f32 %v15, %v545
    %v562 = vmul.f32 %v15, %v546
    %v563 = vmul.f32 %v15, %v547
    %v564 = vmul.f32 %v15, %v548
    %v565 = vmul.f32 %v15, %v549
    %v566 = vmul.f32 %v15, %v550
    %v567 = vmul.f32 %v15, %v551
    %v568 = vmul.f32 %v15, %v552
    %v569 = vmul.f32 %v15, %v553
    %v570 = vmul.f32 %v330, %v554
    %v571 = vmul.f32 %v331, %v555
    %v572 = vmul.f32 %v332, %v556
    %v573 = vmul.f32 %v333, %v557
    %v574 = vmul.f32 %v334, %v558
    %v575 = vmul.f32 %v335, %v559
    %v576 = vmul.f32 %v336, %v560
    %v577 = vmul.f32 %v337, %v561
    %v578 = vmul.f32 %v338, %v562
    %v579 = vmul.f32 %v339, %v563
    %v580 = vmul.f32 %v340, %v564
    %v581 = vmul.f32 %v341, %v565
    %v582 = vmul.f32 %v342, %v566
    %v583 = vmul.f32 %v343, %v567
    %v584 = vmul.f32 %v344, %v568
    %v585 = vmul.f32 %v345, %v569
    %v602 = vrot.slane %v570, 7
    %v603 = vrot.slane %v571, 7
    %v604 = vrot.slane %v572, 7
    %v605 = vrot.slane %v573, 7
    %v606 = vrot.slane %v574, 7
    %v607 = vrot.slane %v575, 7
    %v608 = vrot.slane %v576, 7
    %v609 = vrot.slane %v577, 7
    %v610 = vrot.slane %v578, 7
    %v611 = vrot.slane %v579, 7
    %v612 = vrot.slane %v580, 7
    %v613 = vrot.slane %v581, 7
    %v614 = vrot.slane %v582, 7
    %v615 = vrot.slane %v583, 7
    %v616 = vrot.slane %v584, 7
    %v617 = vrot.slane %v585, 7
    %v634 = vsub.f32 %v15, %v602
    %v635 = vsub.f32 %v15, %v603
    %v636 = vsub.f32 %v15, %v604
    %v637 = vsub.f32 %v15, %v605
    %v638 = vsub.f32 %v15, %v606
    %v639 = vsub.f32 %v15, %v607
    %v640 = vsub.f32 %v15, %v608
    %v641 = vsub.f32 %v15, %v609
    %v642 = vsub.f32 %v15, %v610
    %v643 = vsub.f32 %v15, %v611
    %v644 = vsub.f32 %v15, %v612
    %v645 = vsub.f32 %v15, %v613
    %v646 = vsub.f32 %v15, %v614
    %v647 = vsub.f32 %v15, %v615
    %v648 = vsub.f32 %v15, %v616
    %v649 = vsub.f32 %v15, %v617
    %v650 = vlaneseq
    %v651 = vshrl.u32 %v650, 7
    %v652 = vsub.s32 1, %v651
    %v653 = vrot.slane %v554, %v652
    %v654 = vlaneseq
    %v655 = vshrl.u32 %v654, 7
    %v656 = vsub.s32 1, %v655
    %v657 = vrot.slane %v555, %v656
    %v658 = vlaneseq
    %v659 = vshrl.u32 %v658, 7
    %v660 = vsub.s32 1, %v659
    %v661 = vrot.slane %v556, %v660
    %v662 = vlaneseq
    %v663 = vshrl.u32 %v662, 7
    %v664 = vsub.s32 1, %v663
    %v665 = vrot.slane %v557, %v664
    %v666 = vlaneseq
    %v667 = vshrl.u32 %v666, 7
    %v668 = vsub.s32 1, %v667
    %v669 = vrot.slane %v558, %v668
    %v670 = vlaneseq
    %v671 = vshrl.u32 %v670, 7
    %v672 = vsub.s32 1, %v671
    %v673 = vrot.slane %v559, %v672
    %v674 = vlaneseq
    %v675 = vshrl.u32 %v674, 7
    %v676 = vsub.s32 1, %v675
    %v677 = vrot.slane %v560, %v676
    %v678 = vlaneseq
    %v679 = vshrl.u32 %v678, 7
    %v680 = vsub.s32 1, %v679
    %v681 = vrot.slane %v561, %v680
    %v682 = vlaneseq
    %v683 = vshrl.u32 %v682, 7
    %v684 = vsub.s32 1, %v683
    %v685 = vrot.slane %v562, %v684
    %v686 = vlaneseq
    %v687 = vshrl.u32 %v686, 7
    %v688 = vsub.s32 1, %v687
    %v689 = vrot.slane %v563, %v688
    %v690 = vlaneseq
    %v691 = vshrl.u32 %v690, 7
    %v692 = vsub.s32 1, %v691
    %v693 = vrot.slane %v564, %v692
    %v694 = vlaneseq
    %v695 = vshrl.u32 %v694, 7
    %v696 = vsub.s32 1, %v695
    %v697 = vrot.slane %v565, %v696
    %v698 = vlaneseq
    %v699 = vshrl.u32 %v698, 7
    %v700 = vsub.s32 1, %v699
    %v701 = vrot.slane %v566, %v700
    %v702 = vlaneseq
    %v703 = vshrl.u32 %v702, 7
    %v704 = vsub.s32 1, %v703
    %v705 = vrot.slane %v567, %v704
    %v706 = vlaneseq
    %v707 = vshrl.u32 %v706, 7
    %v708 = vsub.s32 1, %v707
    %v709 = vrot.slane %v568, %v708
    %v710 = vlaneseq
    %v711 = vshrl.u32 %v710, 7
    %v712 = vsub.s32 1, %v711
    %v713 = vrot.slane %v569, %v712
    %v714 = vmul.f32 %v156, %v653
    %v715 = vmul.f32 %v161, %v657
    %v716 = vmul.f32 %v166, %v661
    %v717 = vmul.f32 %v171, %v665
    %v718 = vmul.f32 %v176, %v669
    %v719 = vmul.f32 %v181, %v673
    %v720 = vmul.f32 %v186, %v677
    %v721 = vmul.f32 %v191, %v681
    %v722 = vmul.f32 %v196, %v685
    %v723 = vmul.f32 %v201, %v689
    %v724 = vmul.f32 %v206, %v693
    %v725 = vmul.f32 %v211, %v697
    %v726 = vmul.f32 %v216, %v701
    %v727 = vmul.f32 %v221, %v705
    %v728 = vmul.f32 %v226, %v709
    %v729 = vmul.f32 %v231, %v713
    %v730 = vlaneseq
    %v731 = vshrl.u32 %v730, 7
    %v732 = vsub.s32 2, %v731
    %v733 = vrot.slane %v634, %v732
    %v734 = vlaneseq
    %v735 = vshrl.u32 %v734, 7
    %v736 = vsub.s32 2, %v735
    %v737 = vrot.slane %v635, %v736
    %v738 = vlaneseq
    %v739 = vshrl.u32 %v738, 7
    %v740 = vsub.s32 2, %v739
    %v741 = vrot.slane %v636, %v740
    %v742 = vlaneseq
    %v743 = vshrl.u32 %v742, 7
    %v744 = vsub.s32 2, %v743
    %v745 = vrot.slane %v637, %v744
    %v746 = vlaneseq
    %v747 = vshrl.u32 %v746, 7
    %v748 = vsub.s32 2, %v747
    %v749 = vrot.slane %v638, %v748
    %v750 = vlaneseq
    %v751 = vshrl.u32 %v750, 7
    %v752 = vsub.s32 2, %v751
    %v753 = vrot.slane %v639, %v752
    %v754 = vlaneseq
    %v755 = vshrl.u32 %v754, 7
    %v756 = vsub.s32 2, %v755
    %v757 = vrot.slane %v640, %v756
    %v758 = vlaneseq
    %v759 = vshrl.u32 %v758, 7
    %v760 = vsub.s32 2, %v759
    %v761 = vrot.slane %v641, %v760
    %v762 = vlaneseq
    %v763 = vshrl.u32 %v762, 7
    %v764 = vsub.s32 2, %v763
    %v765 = vrot.slane %v642, %v764
    %v766 = vlaneseq
    %v767 = vshrl.u32 %v766, 7
    %v768 = vsub.s32 2, %v767
    %v769 = vrot.slane %v643, %v768
    %v770 = vlaneseq
    %v771 = vshrl.u32 %v770, 7
    %v772 = vsub.s32 2, %v771
    %v773 = vrot.slane %v644, %v772
    %v774 = vlaneseq
    %v775 = vshrl.u32 %v774, 7
    %v776 = vsub.s32 2, %v775
    %v777 = vrot.slane %v645, %v776
    %v778 = vlaneseq
    %v779 = vshrl.u32 %v778, 7
    %v780 = vsub.s32 2, %v779
    %v781 = vrot.slane %v646, %v780
    %v782 = vlaneseq
    %v783 = vshrl.u32 %v782, 7
    %v784 = vsub.s32 2, %v783
    %v785 = vrot.slane %v647, %v784
    %v786 = vlaneseq
    %v787 = vshrl.u32 %v786, 7
    %v788 = vsub.s32 2, %v787
    %v789 = vrot.slane %v648, %v788
    %v790 = vlaneseq
    %v791 = vshrl.u32 %v790, 7
    %v792 = vsub.s32 2, %v791
    %v793 = vrot.slane %v649, %v792
    %v794 = vadd.f32 %v714, %v733
    %v795 = vadd.f32 %v715, %v737
    %v796 = vadd.f32 %v716, %v741
    %v797 = vadd.f32 %v717, %v745
    %v798 = vadd.f32 %v718, %v749
    %v799 = vadd.f32 %v719, %v753
    %v800 = vadd.f32 %v720, %v757
    %v801 = vadd.f32 %v721, %v761
    %v802 = vadd.f32 %v722, %v765
    %v803 = vadd.f32 %v723, %v769
    %v804 = vadd.f32 %v724, %v773
    %v805 = vadd.f32 %v725, %v777
    %v806 = vadd.f32 %v726, %v781
    %v807 = vadd.f32 %v727, %v785
    %v808 = vadd.f32 %v728, %v789
    %v809 = vadd.f32 %v729, %v793
    %v810 = vxor.u32 %v794, 2147483648
    %v811 = vxor.u32 %v795, 2147483648
    %v812 = vxor.u32 %v796, 2147483648
    %v813 = vxor.u32 %v797, 2147483648
    %v814 = vxor.u32 %v798, 2147483648
    %v815 = vxor.u32 %v799, 2147483648
    %v816 = vxor.u32 %v800, 2147483648
    %v817 = vxor.u32 %v801, 2147483648
    %v818 = vxor.u32 %v802, 2147483648
    %v819 = vxor.u32 %v803, 2147483648
    %v820 = vxor.u32 %v804, 2147483648
    %v821 = vxor.u32 %v805, 2147483648
    %v822 = vxor.u32 %v806, 2147483648
    %v823 = vxor.u32 %v807, 2147483648
    %v824 = vxor.u32 %v808, 2147483648
    %v825 = vxor.u32 %v809, 2147483648
    %v826 = vmul.f32 %v810, 1.442695
    %v827 = vpow.pop %v826
    %v828 = vmul.f32 %v811, 1.442695
    %v829 = vpow.pop %v828
    %v830 = vmul.f32 %v812, 1.442695
    %v831 = vpow.pop %v830
    %v832 = vmul.f32 %v813, 1.442695
    %v833 = vpow.pop %v832
    %v834 = vmul.f32 %v814, 1.442695
    %v835 = vpow.pop %v834
    %v836 = vmul.f32 %v815, 1.442695
    %v837 = vpow.pop %v836
    %v838 = vmul.f32 %v816, 1.442695
    %v839 = vpow.pop %v838
    %v840 = vmul.f32 %v817, 1.442695
    %v841 = vpow.pop %v840
    %v842 = vmul.f32 %v818, 1.442695
    %v843 = vpow.pop %v842
    %v844 = vmul.f32 %v819, 1.442695
    %v845 = vpow.pop %v844
    %v846 = vmul.f32 %v820, 1.442695
    %v847 = vpow.pop %v846
    %v848 = vmul.f32 %v821, 1.442695
    %v849 = vpow.pop %v848
    %v850 = vmul.f32 %v822, 1.442695
    %v851 = vpow.pop %v850
    %v852 = vmul.f32 %v823, 1.442695
    %v853 = vpow.pop %v852
    %v854 = vmul.f32 %v824, 1.442695
    %v855 = vpow.pop %v854
    %v856 = vmul.f32 %v825, 1.442695
    %v857 = vpow.pop %v856
    %v858 = vadd.f32 %v827, 1.0
    %v859 = vadd.f32 %v829, 1.0
    %v860 = vadd.f32 %v831, 1.0
    %v861 = vadd.f32 %v833, 1.0
    %v862 = vadd.f32 %v835, 1.0
    %v863 = vadd.f32 %v837, 1.0
    %v864 = vadd.f32 %v839, 1.0
    %v865 = vadd.f32 %v841, 1.0
    %v866 = vadd.f32 %v843, 1.0
    %v867 = vadd.f32 %v845, 1.0
    %v868 = vadd.f32 %v847, 1.0
    %v869 = vadd.f32 %v849, 1.0
    %v870 = vadd.f32 %v851, 1.0
    %v871 = vadd.f32 %v853, 1.0
    %v872 = vadd.f32 %v855, 1.0
    %v873 = vadd.f32 %v857, 1.0
    %v874 = vrcp.pop %v858
    %v875 = vmul.f32 1.0, %v874
    %v876 = vrcp.pop %v859
    %v877 = vmul.f32 1.0, %v876
    %v878 = vrcp.pop %v860
    %v879 = vmul.f32 1.0, %v878
    %v880 = vrcp.pop %v861
    %v881 = vmul.f32 1.0, %v880
    %v882 = vrcp.pop %v862
    %v883 = vmul.f32 1.0, %v882
    %v884 = vrcp.pop %v863
    %v885 = vmul.f32 1.0, %v884
    %v886 = vrcp.pop %v864
    %v887 = vmul.f32 1.0, %v886
    %v888 = vrcp.pop %v865
    %v889 = vmul.f32 1.0, %v888
    %v890 = vrcp.pop %v866
    %v891 = vmul.f32 1.0, %v890
    %v892 = vrcp.pop %v867
    %v893 = vmul.f32 1.0, %v892
    %v894 = vrcp.pop %v868
    %v895 = vmul.f32 1.0, %v894
    %v896 = vrcp.pop %v869
    %v897 = vmul.f32 1.0, %v896
    %v898 = vrcp.pop %v870
    %v899 = vmul.f32 1.0, %v898
    %v900 = vrcp.pop %v871
    %v901 = vmul.f32 1.0, %v900
    %v902 = vrcp.pop %v872
    %v903 = vmul.f32 1.0, %v902
    %v904 = vrcp.pop %v873
    %v905 = vmul.f32 1.0, %v904
    %906 = vadd.xlane.f32.xlu0 %v875
    %v907 = vpop.xlane.xlu0 %906
    %908 = vadd.xlane.f32.xlu0 %v877
    %v909 = vpop.xlane.xlu0 %908
    %910 = vadd.xlane.f32.xlu0 %v879
    %v911 = vpop.xlane.xlu0 %910
    %912 = vadd.xlane.f32.xlu0 %v881
    %v913 = vpop.xlane.xlu0 %912
    %914 = vadd.xlane.f32.xlu0 %v883
    %v915 = vpop.xlane.xlu0 %914
    %916 = vadd.xlane.f32.xlu0 %v885
    %v917 = vpop.xlane.xlu0 %916
    %918 = vadd.xlane.f32.xlu0 %v887
    %v919 = vpop.xlane.xlu0 %918
    %920 = vadd.xlane.f32.xlu0 %v889
    %v921 = vpop.xlane.xlu0 %920
    %922 = vadd.xlane.f32.xlu0 %v891
    %v923 = vpop.xlane.xlu0 %922
    %924 = vadd.xlane.f32.xlu0 %v893
    %v925 = vpop.xlane.xlu0 %924
    %926 = vadd.xlane.f32.xlu0 %v895
    %v927 = vpop.xlane.xlu0 %926
    %928 = vadd.xlane.f32.xlu0 %v897
    %v929 = vpop.xlane.xlu0 %928
    %930 = vadd.xlane.f32.xlu0 %v899
    %v931 = vpop.xlane.xlu0 %930
    %932 = vadd.xlane.f32.xlu0 %v901
    %v933 = vpop.xlane.xlu0 %932
    %934 = vadd.xlane.f32.xlu0 %v903
    %v935 = vpop.xlane.xlu0 %934
    %936 = vadd.xlane.f32.xlu0 %v905
    %v937 = vpop.xlane.xlu0 %936
    %v938 = vrcp.pop %v907
    %v939 = vmul.f32 %v875, %v938
    %v940 = vrcp.pop %v909
    %v941 = vmul.f32 %v877, %v940
    %v942 = vrcp.pop %v911
    %v943 = vmul.f32 %v879, %v942
    %v944 = vrcp.pop %v913
    %v945 = vmul.f32 %v881, %v944
    %v946 = vrcp.pop %v915
    %v947 = vmul.f32 %v883, %v946
    %v948 = vrcp.pop %v917
    %v949 = vmul.f32 %v885, %v948
    %v950 = vrcp.pop %v919
    %v951 = vmul.f32 %v887, %v950
    %v952 = vrcp.pop %v921
    %v953 = vmul.f32 %v889, %v952
    %v954 = vrcp.pop %v923
    %v955 = vmul.f32 %v891, %v954
    %v956 = vrcp.pop %v925
    %v957 = vmul.f32 %v893, %v956
    %v958 = vrcp.pop %v927
    %v959 = vmul.f32 %v895, %v958
    %v960 = vrcp.pop %v929
    %v961 = vmul.f32 %v897, %v960
    %v962 = vrcp.pop %v931
    %v963 = vmul.f32 %v899, %v962
    %v964 = vrcp.pop %v933
    %v965 = vmul.f32 %v901, %v964
    %v966 = vrcp.pop %v935
    %v967 = vmul.f32 %v903, %v966
    %v968 = vrcp.pop %v937
    %v969 = vmul.f32 %v905, %v968
    %970 = vst [vmem:[#allocation2] sm:$0xff] %v939
    %971 = vst [vmem:[#allocation2 + $0x8] sm:$0xff] %v941
    %972 = vst [vmem:[#allocation2 + $0x10] sm:$0xff] %v943
    %973 = vst [vmem:[#allocation2 + $0x18] sm:$0xff] %v945
    %974 = vst [vmem:[#allocation2 + $0x20] sm:$0xff] %v947
    %975 = vst [vmem:[#allocation2 + $0x28] sm:$0xff] %v949
    %976 = vst [vmem:[#allocation2 + $0x30] sm:$0xff] %v951
    %977 = vst [vmem:[#allocation2 + $0x38] sm:$0xff] %v953
    %978 = vst [vmem:[#allocation2 + $0x40] sm:$0xff] %v955
    %979 = vst [vmem:[#allocation2 + $0x48] sm:$0xff] %v957
    %980 = vst [vmem:[#allocation2 + $0x50] sm:$0xff] %v959
    %981 = vst [vmem:[#allocation2 + $0x58] sm:$0xff] %v961
    %982 = vst [vmem:[#allocation2 + $0x60] sm:$0xff] %v963
    %983 = vst [vmem:[#allocation2 + $0x68] sm:$0xff] %v965
    %984 = vst [vmem:[#allocation2 + $0x70] sm:$0xff] %v967
    %985 = vst [vmem:[#allocation2 + $0x78] sm:$0xff] %v969
    // Predicated region
    $region14: #{tpu_custom_call.1} parent=1 // pred_check
      _
    $region15: #{tpu_custom_call.1} parent=1 // pred_check_branch
      %987 = sbr.rel (0) target = $region17
    $region16: #{tpu_custom_call.1} parent=1 // pred_region
      %s989 = ssub.s32 2048, 2048
      %990 = vsyncadd [#allocation3], %s989
      %s991 = sshll.u32 [#allocation2], 4
      %s992 = int_to_ptr.vmem [resolvable:$true] %s991
      %997 = dma.vmem_to_hbm [thread:$0]  %s992, 2048, %s3, [#allocation3], 128, 128, 8
    $region17: #{tpu_custom_call.1} parent=1 // pred_fallthru
      _
    // Predicated region
    $region18: #{tpu_custom_call.1} parent=1 // pred_check
      _
    $region19: #{tpu_custom_call.1} parent=1 // pred_check_branch
      %999 = sbr.rel (0) target = $region21
    $region20: #{tpu_custom_call.1} parent=1 // pred_region
      %1000 = dma.done [#allocation3], 2048
    $region21: #{tpu_custom_call.1} parent=1 // pred_fallthru
      _
    %1001 = vsyncpa [#allocation3], 1

</llo_original>
